<compile_context>
chip_gen: v5e
topology: v5e:2x2
jax: 0.10.0
libtpu: 0.0.40
codegen_flags: <defaults>
</compile_context>

<pallas_src>
import numpy as np
import jax
import jax.numpy as jnp
from jax import lax
from jax.experimental import pallas as pl
from jax.experimental.pallas import tpu as pltpu


def _round_up(v, m):
    return ((v + m - 1) // m) * m


# Contract over the feature axis (axis 1) of both operands: a @ b.T with no
# explicit transpose (same pattern as flash attention's q.k^T contraction).
_GRAM_DNUMS = (((1,), (1,)), ((), ()))


def _tile_dot(a, b):
    return lax.dot_general(a, b, dimension_numbers=_GRAM_DNUMS,
                           preferred_element_type=jnp.float32)


def _gram_kernel_single(i_tbl, j_tbl, a_ref, b_ref, o_ref):
    """Single k step: write the tile directly (no zero-init + accumulate)."""
    del i_tbl, j_tbl
    o_ref[...] = _tile_dot(a_ref[...], b_ref[...]).astype(o_ref.dtype)


def _gram_kernel_f32(i_tbl, j_tbl, a_ref, b_ref, o_ref):
    """Multi k step, f32 output: accumulate directly into the output block."""
    del i_tbl, j_tbl
    k = pl.program_id(1)

    @pl.when(k == 0)
    def _():
        o_ref[...] = jnp.zeros_like(o_ref)

    o_ref[...] += _tile_dot(a_ref[...], b_ref[...])


def _gram_kernel_acc(i_tbl, j_tbl, a_ref, b_ref, o_ref, acc_ref):
    """Multi k step, narrow output dtype: f32 VMEM scratch accumulator."""
    del i_tbl, j_tbl
    k = pl.program_id(1)

    @pl.when(k == 0)
    def _():
        acc_ref[...] = jnp.zeros_like(acc_ref)

    acc_ref[...] += _tile_dot(a_ref[...], b_ref[...])

    @pl.when(k == pl.num_programs(1) - 1)
    def _():
        o_ref[...] = acc_ref[...].astype(o_ref.dtype)


def _pick_row_tile(n_pad):
    # Largest tile (multiple of 128) dividing the 128-padded N; 512 keeps the
    # working set inside v7x's VMEM while giving good intensity on v6e.
    for t in (512, 384, 256, 128):
        if t <= n_pad and n_pad % t == 0:
            return t
    return 128  # unreachable: n_pad is a multiple of 128


def _pick_k_tile(d_pad, max_tk):
    if d_pad <= max_tk:
        return d_pad  # single k step: no o_ref RMW, A-panel DMA skipped across j
    t = (max_tk // 128) * 128
    while t > 128 and d_pad % t != 0:
        t -= 128
    return t


def linear_kernel_forward(x, *, max_tk=2048):
    """Pallas equivalent of LinearKernel.forward: torch.matmul(x, x.t())."""
    if x.ndim != 2:
        raise ValueError(f"LinearKernel expects a 2-D input, got shape {x.shape}")
    if max_tk < 128:
        raise ValueError("max_tk must be >= 128")
    N, D = x.shape

    # Zero padding is exact for the Gram matrix: extra zero feature columns
    # contribute nothing; extra zero rows are sliced off below.
    n_pad = _round_up(N, 128)
    d_pad = _round_up(D, 128)
    if (n_pad, d_pad) != (N, D):
        x_p = jnp.pad(x, ((0, n_pad - N), (0, d_pad - D)))
    else:
        x_p = x

    t = _pick_row_tile(n_pad)           # tm == tn == t by construction
    tk = _pick_k_tile(d_pad, max_tk)
    n_tiles = n_pad // t
    k_steps = d_pad // tk

    # Upper-triangular tile-pair enumeration (row-major => A panel constant
    # across each run of pairs, so its re-DMA is skipped by the pipeline).
    ii, jj = np.triu_indices(n_tiles)
    i_tbl = jnp.asarray(ii, dtype=jnp.int32)
    j_tbl = jnp.asarray(jj, dtype=jnp.int32)
    n_pairs = int(ii.shape[0])

    single_k = k_steps == 1
    direct_f32 = x.dtype == jnp.float32
    if single_k:
        kernel, scratch = _gram_kernel_single, []
    elif direct_f32:
        kernel, scratch = _gram_kernel_f32, []
    else:
        kernel, scratch = _gram_kernel_acc, [pltpu.VMEM((t, t), jnp.float32)]

    # VMEM budget from the actual tile working set (double-buffered in/out),
    # clamped to 48 MiB so we never request v7x's full 64 MiB physical VMEM.
    item = jnp.dtype(x.dtype).itemsize
    working = (2 * (t * tk) * item * 2          # A + B blocks, double-buffered
               + 2 * (t * t) * item             # output block, double-buffered
               + (t * t * 4 if scratch else 0))  # f32 accumulator scratch
    vmem_limit = int(min(max(working * 3 // 2, 32 * 1024 * 1024),
                         48 * 1024 * 1024))

    out = pl.pallas_call(
        kernel,
        out_shape=jax.ShapeDtypeStruct((n_pad, n_pad), x.dtype),
        grid_spec=pltpu.PrefetchScalarGridSpec(
            num_scalar_prefetch=2,
            grid=(n_pairs, k_steps),
            in_specs=[
                pl.BlockSpec((t, tk), lambda p, k, it, jt: (it[p], k)),  # rows i
                pl.BlockSpec((t, tk), lambda p, k, it, jt: (jt[p], k)),  # rows j
            ],
            out_specs=pl.BlockSpec((t, t), lambda p, k, it, jt: (it[p], jt[p])),
            scratch_shapes=scratch,
        ),
        compiler_params=pltpu.CompilerParams(
            dimension_semantics=("parallel", "arbitrary"),
            vmem_limit_bytes=vmem_limit,
        ),
    )(i_tbl, j_tbl, x_p, x_p)

    if n_pad != N:
        out = out[:N, :N]
    # Mirror the computed upper triangle into the (uncomputed) lower triangle.
    upper = jnp.triu(out)
    return upper + jnp.triu(out, 1).T


if __name__ == "__main__":
    # Small deterministic shapes: N samples x D features.
    x = jax.random.normal(jax.random.PRNGKey(0), (64, 48), dtype=jnp.float32)
    out = jax.block_until_ready(linear_kernel_forward(x))
    assert out.shape == (64, 64)
    assert jnp.allclose(out, x @ x.T, atol=1e-2, rtol=1e-3), "small-shape mismatch"

    # Multi-tile symmetric path + row/feature padding (N=300 -> 384, D=200 -> 256).
    x2 = jax.random.normal(jax.random.PRNGKey(1), (300, 200), dtype=jnp.float32)
    out2 = jax.block_until_ready(linear_kernel_forward(x2))
    assert out2.shape == (300, 300)
    assert jnp.allclose(out2, x2 @ x2.T, atol=1e-2, rtol=1e-3), "padded-path mismatch"

    # Multi-k accumulation paths (force small tk): f32 direct accumulation ...
    x3 = jax.random.normal(jax.random.PRNGKey(2), (200, 384), dtype=jnp.float32)
    out3 = jax.block_until_ready(linear_kernel_forward(x3, max_tk=128))
    assert jnp.allclose(out3, x3 @ x3.T, atol=1e-2, rtol=1e-3), "multi-k f32 mismatch"

    # ... and the narrow-dtype f32-scratch path (bf16).
    x4 = x3.astype(jnp.bfloat16)
    out4 = jax.block_until_ready(linear_kernel_forward(x4, max_tk=128))
    ref4 = x4.astype(jnp.float32) @ x4.astype(jnp.float32).T
    assert out4.dtype == jnp.bfloat16
    assert jnp.allclose(out4.astype(jnp.float32), ref4, atol=0.5, rtol=5e-2), \
        "multi-k bf16 mismatch"

    print("KERNEL_OK")
</pallas_src>

<mosaic_0001>
module attributes {stable_mosaic.version = 11 : i64} {
  func.func @_gram_kernel_single(%arg0: i32, %arg1: i32, %arg2: memref<1xi32, #tpu.memory_space<smem>>, %arg3: memref<1xi32, #tpu.memory_space<smem>>, %arg4: memref<128x128xf32, #tpu.memory_space<vmem>>, %arg5: memref<128x128xf32, #tpu.memory_space<vmem>>, %arg6: memref<128x128xf32, #tpu.memory_space<vmem>>) attributes {dimension_semantics = [#tpu.dimension_semantics<parallel>, #tpu.dimension_semantics<arbitrary>], iteration_bounds = array<i64: 1, 1>, scalar_prefetch = 2 : i64, scratch_operands = 0 : i64, tpu.core_type = #tpu.core_type<tc>, window_params = [{transform_indices = @transform_0, window_bounds = array<i64: 128, 128>}, {transform_indices = @transform_1, window_bounds = array<i64: 128, 128>}, {transform_indices = @transform_2, window_bounds = array<i64: 128, 128>}]} {
    %c0 = arith.constant 0 : index
    %c0_0 = arith.constant 0 : index
    %0 = vector.load %arg4[%c0, %c0_0] : memref<128x128xf32, #tpu.memory_space<vmem>>, vector<128x128xf32>
    %c0_1 = arith.constant 0 : index
    %c0_2 = arith.constant 0 : index
    %1 = vector.load %arg5[%c0_1, %c0_2] : memref<128x128xf32, #tpu.memory_space<vmem>>, vector<128x128xf32>
    %cst = arith.constant dense<0.000000e+00> : vector<128x128xf32>
    %2 = tpu.matmul %0, %1, %cst {dimension_numbers = #tpu.dot_dimension_numbers<[1], [1], [0], [0], [0, 0, 1, 0], [], []>} : vector<128x128xf32>, vector<128x128xf32>, vector<128x128xf32> -> vector<128x128xf32>
    %c0_3 = arith.constant 0 : index
    %c0_4 = arith.constant 0 : index
    %3 = vector.load %arg6[%c0_3, %c0_4] : memref<128x128xf32, #tpu.memory_space<vmem>>, vector<128x128xf32>
    tpu.vector_store %arg6[%c0_3, %c0_4], %2 {strides = array<i32>} : memref<128x128xf32, #tpu.memory_space<vmem>>, vector<128x128xf32>,
    return
  }
  func.func @transform_0(%arg0: i32, %arg1: i32, %arg2: memref<1xi32, #tpu.memory_space<smem>>, %arg3: memref<1xi32, #tpu.memory_space<smem>>) -> (i32, i32) {
    %0 = arith.index_cast %arg0 : i32 to index
    %1 = memref.load %arg2[%0] : memref<1xi32, #tpu.memory_space<smem>>
    %c0_i32 = arith.constant 0 : i32
    return %1, %arg1 : i32, i32
  }
  func.func @transform_1(%arg0: i32, %arg1: i32, %arg2: memref<1xi32, #tpu.memory_space<smem>>, %arg3: memref<1xi32, #tpu.memory_space<smem>>) -> (i32, i32) {
    %0 = arith.index_cast %arg0 : i32 to index
    %1 = memref.load %arg3[%0] : memref<1xi32, #tpu.memory_space<smem>>
    %c0_i32 = arith.constant 0 : i32
    return %1, %arg1 : i32, i32
  }
  func.func @transform_2(%arg0: i32, %arg1: i32, %arg2: memref<1xi32, #tpu.memory_space<smem>>, %arg3: memref<1xi32, #tpu.memory_space<smem>>) -> (i32, i32) {
    %0 = arith.index_cast %arg0 : i32 to index
    %1 = memref.load %arg2[%0] : memref<1xi32, #tpu.memory_space<smem>>
    %2 = arith.index_cast %arg0 : i32 to index
    %3 = memref.load %arg3[%2] : memref<1xi32, #tpu.memory_space<smem>>
    %c0_i32 = arith.constant 0 : i32
    return %1, %3 : i32, i32
  }
}

</mosaic_0001>

<llo_original>
// kernel: tpu_custom_call.1
$region0: #{tpu_custom_call.1}
  #allocation0 [shape = 'u32[]', space=smem, size = 0x4, offset = 0x4, fixed_abs, tag = 'smem constant byte address 0x4 - core index']
  #allocation1 [shape = 'u32[72,128]{1,0:T(1,128)}', space=vmem, size = 0x9000, scoped, tag = 'internal scratch']
  #allocation2 [shape = 's32[1]{0}', space=sflag, size = 0x4, scoped, tag = 'scoped memory for tpu_custom_call.1']
  #allocation3 [shape = 's32[1]{0:T(128)S(6)}', space=smem, size = 0x200, scoped, tag = 'prefetched SMEM operand 0']
  #allocation4 [shape = 's32[1]{0:T(128)S(6)}', space=smem, size = 0x200, scoped, tag = 'prefetched SMEM operand 1']
  %s0 = inlined_call_operand.<no memory space> [shape: s32[1], index: 0, kind: input, shape index: {}]
  %s1 = inlined_call_operand.<no memory space> [shape: s32[1], index: 1, kind: input, shape index: {}]
  %s2 = inlined_call_operand.hbm [shape: f32[128,128], index: 2, kind: input, shape index: {}]
  %s3 = inlined_call_operand.hbm [shape: f32[128,128], index: 3, kind: input, shape index: {}]
  %s4 = inlined_call_operand.hbm [shape: f32[128,128], index: 4, kind: output, shape index: {}]
  %s5 = sld [smem:[#allocation0]]
  $region26: #{tpu_custom_call.1} parent=0
    _
  %s7 = ssub.s32 1, %s5
  %s8 = scalar_select 0, %s7, %s5
  %9 = sst [smem:[#allocation3]] %s0
  %10 = sst [smem:[#allocation4]] %s1
  $region1: #{tpu_custom_call.1} parent=0
    #allocation5 [shape = 'u8[65536]{0}', space=vmem, size = 0x10000, scoped, tag = 'input window, operand 2, single buffered']
    #allocation6 [shape = 's32[1]{0}', space=sflag, size = 0x4, scoped, tag = 'scoped memory for tpu_custom_call.1']
    #allocation7 [shape = 's32[1]{0}', space=sflag, size = 0x4, scoped, tag = 'scoped memory for tpu_custom_call.1']
    #allocation8 [shape = 'u8[65536]{0}', space=vmem, size = 0x10000, scoped, tag = 'input window, operand 3, single buffered']
    #allocation9 [shape = 's32[1]{0}', space=sflag, size = 0x4, scoped, tag = 'scoped memory for tpu_custom_call.1']
    #allocation10 [shape = 'u8[65536]{0}', space=vmem, size = 0x10000, scoped, tag = 'output window, operand 0, single buffered']
    %11 = vsyncpa [#allocation6], 0
    %12 = vsyncpa [#allocation9], 0
    %13 = vsyncpa [#allocation7], 0
    // Predicated region
    $region2: #{tpu_custom_call.1} parent=1 // pred_check
      _
    $region3: #{tpu_custom_call.1} parent=1 // pred_check_branch
      %15 = sbr.rel (0) target = $region5
    $region4: #{tpu_custom_call.1} parent=1 // pred_region
      %s16 = sld [smem:[#allocation3]]
      %s17 = smul.u32 16, %s16
      %19 = vsyncadd [#allocation6], 0
      %s20 = smul.addr %s17, 8
      %s21 = scalar_lea.hbm %s2, %s20
      %s22 = sshll.u32 %s21, 4
      %s23 = int_to_ptr.hbm [resolvable:$true] %s22
      %s24 = sshll.u32 [#allocation5], 4
      %s25 = int_to_ptr.vmem [resolvable:$true] %s24
      %30 = dma.hbm_to_vmem [thread:$0]  %s23, 2048, %s25, [#allocation6], 128, 128, 8
    $region5: #{tpu_custom_call.1} parent=1 // pred_fallthru
      _
    // Predicated region
    $region6: #{tpu_custom_call.1} parent=1 // pred_check
      _
    $region7: #{tpu_custom_call.1} parent=1 // pred_check_branch
      %32 = sbr.rel (0) target = $region9
    $region8: #{tpu_custom_call.1} parent=1 // pred_region
      %s33 = sld [smem:[#allocation4]]
      %s34 = smul.u32 16, %s33
      %36 = vsyncadd [#allocation9], 0
      %s37 = smul.addr %s34, 8
      %s38 = scalar_lea.hbm %s3, %s37
      %s39 = sshll.u32 %s38, 4
      %s40 = int_to_ptr.hbm [resolvable:$true] %s39
      %s41 = sshll.u32 [#allocation8], 4
      %s42 = int_to_ptr.vmem [resolvable:$true] %s41
      %47 = dma.hbm_to_vmem [thread:$0]  %s40, 2048, %s42, [#allocation9], 128, 128, 8
    $region9: #{tpu_custom_call.1} parent=1 // pred_fallthru
      _
    // Predicated region
    $region10: #{tpu_custom_call.1} parent=1 // pred_check
      _
    $region11: #{tpu_custom_call.1} parent=1 // pred_check_branch
      %49 = sbr.rel (0) target = $region13
    $region12: #{tpu_custom_call.1} parent=1 // pred_region
      %51 = dma.done [#allocation6], 2048
    $region13: #{tpu_custom_call.1} parent=1 // pred_fallthru
      _
    // Predicated region
    $region14: #{tpu_custom_call.1} parent=1 // pred_check
      _
    $region15: #{tpu_custom_call.1} parent=1 // pred_check_branch
      %53 = sbr.rel (0) target = $region17
    $region16: #{tpu_custom_call.1} parent=1 // pred_region
      %55 = dma.done [#allocation9], 2048
    $region17: #{tpu_custom_call.1} parent=1 // pred_fallthru
      _
    %s56 = sld [smem:[#allocation3]]
    %s57 = smul.u32 16, %s56
    %s58 = sld [smem:[#allocation4]]
    %s59 = smul.u32 16, %s58
    %s60 = sld [smem:[#allocation3]]
    %s61 = sld [smem:[#allocation4]]
    %s62 = smul.u32 16, %s60
    %v63 = vld [vmem:[#allocation5] sm:$0xff]
    %v64 = vld [vmem:[#allocation5 + $0x8] sm:$0xff]
    %v65 = vld [vmem:[#allocation5 + $0x10] sm:$0xff]
    %v66 = vld [vmem:[#allocation5 + $0x18] sm:$0xff]
    %v67 = vld [vmem:[#allocation5 + $0x20] sm:$0xff]
    %v68 = vld [vmem:[#allocation5 + $0x28] sm:$0xff]
    %v69 = vld [vmem:[#allocation5 + $0x30] sm:$0xff]
    %v70 = vld [vmem:[#allocation5 + $0x38] sm:$0xff]
    %v71 = vld [vmem:[#allocation5 + $0x40] sm:$0xff]
    %v72 = vld [vmem:[#allocation5 + $0x48] sm:$0xff]
    %v73 = vld [vmem:[#allocation5 + $0x50] sm:$0xff]
    %v74 = vld [vmem:[#allocation5 + $0x58] sm:$0xff]
    %v75 = vld [vmem:[#allocation5 + $0x60] sm:$0xff]
    %v76 = vld [vmem:[#allocation5 + $0x68] sm:$0xff]
    %v77 = vld [vmem:[#allocation5 + $0x70] sm:$0xff]
    %v78 = vld [vmem:[#allocation5 + $0x78] sm:$0xff]
    %v79 = vld [vmem:[#allocation8] sm:$0xff]
    %v80 = vld [vmem:[#allocation8 + $0x8] sm:$0xff]
    %v81 = vld [vmem:[#allocation8 + $0x10] sm:$0xff]
    %v82 = vld [vmem:[#allocation8 + $0x18] sm:$0xff]
    %v83 = vld [vmem:[#allocation8 + $0x20] sm:$0xff]
    %v84 = vld [vmem:[#allocation8 + $0x28] sm:$0xff]
    %v85 = vld [vmem:[#allocation8 + $0x30] sm:$0xff]
    %v86 = vld [vmem:[#allocation8 + $0x38] sm:$0xff]
    %v87 = vld [vmem:[#allocation8 + $0x40] sm:$0xff]
    %v88 = vld [vmem:[#allocation8 + $0x48] sm:$0xff]
    %v89 = vld [vmem:[#allocation8 + $0x50] sm:$0xff]
    %v90 = vld [vmem:[#allocation8 + $0x58] sm:$0xff]
    %v91 = vld [vmem:[#allocation8 + $0x60] sm:$0xff]
    %v92 = vld [vmem:[#allocation8 + $0x68] sm:$0xff]
    %v93 = vld [vmem:[#allocation8 + $0x70] sm:$0xff]
    %v94 = vld [vmem:[#allocation8 + $0x78] sm:$0xff]
    %95 = vmatpush.xpose.msra.mxu0 %v94
    %96 = vmatpush.xpose.msra.mxu0 %v93
    %97 = vmatpush.xpose.msra.mxu0 %v92
    %98 = vmatpush.xpose.msra.mxu0 %v91
    %99 = vmatpush.xpose.msra.mxu0 %v90
    %100 = vmatpush.xpose.msra.mxu0 %v89
    %101 = vmatpush.xpose.msra.mxu0 %v88
    %102 = vmatpush.xpose.msra.mxu0 %v87
    %103 = vmatpush.xpose.msra.mxu0 %v86
    %104 = vmatpush.xpose.msra.mxu0 %v85
    %105 = vmatpush.xpose.msra.mxu0 %v84
    %106 = vmatpush.xpose.msra.mxu0 %v83
    %107 = vmatpush.xpose.msra.mxu0 %v82
    %108 = vmatpush.xpose.msra.mxu0 %v81
    %109 = vmatpush.xpose.msra.mxu0 %v80
    %110 = vmatpush.xpose.msra.mxu0 %v79
    %111 = vmatmul.f32.gmra.mxu0 %v63
    %v112 = vpop.f32.mrf.mxu0
    %v113 = vadd.f32 0.0, %v112
    %114 = vmatmul.f32.gmra.mxu0 %v64
    %v115 = vpop.f32.mrf.mxu0
    %v116 = vadd.f32 0.0, %v115
    %117 = vmatmul.f32.gmra.mxu0 %v65
    %v118 = vpop.f32.mrf.mxu0
    %v119 = vadd.f32 0.0, %v118
    %120 = vmatmul.f32.gmra.mxu0 %v66
    %v121 = vpop.f32.mrf.mxu0
    %v122 = vadd.f32 0.0, %v121
    %123 = vmatmul.f32.gmra.mxu0 %v67
    %v124 = vpop.f32.mrf.mxu0
    %v125 = vadd.f32 0.0, %v124
    %126 = vmatmul.f32.gmra.mxu0 %v68
    %v127 = vpop.f32.mrf.mxu0
    %v128 = vadd.f32 0.0, %v127
    %129 = vmatmul.f32.gmra.mxu0 %v69
    %v130 = vpop.f32.mrf.mxu0
    %v131 = vadd.f32 0.0, %v130
    %132 = vmatmul.f32.gmra.mxu0 %v70
    %v133 = vpop.f32.mrf.mxu0
    %v134 = vadd.f32 0.0, %v133
    %135 = vmatmul.f32.gmra.mxu0 %v71
    %v136 = vpop.f32.mrf.mxu0
    %v137 = vadd.f32 0.0, %v136
    %138 = vmatmul.f32.gmra.mxu0 %v72
    %v139 = vpop.f32.mrf.mxu0
    %v140 = vadd.f32 0.0, %v139
    %141 = vmatmul.f32.gmra.mxu0 %v73
    %v142 = vpop.f32.mrf.mxu0
    %v143 = vadd.f32 0.0, %v142
    %144 = vmatmul.f32.gmra.mxu0 %v74
    %v145 = vpop.f32.mrf.mxu0
    %v146 = vadd.f32 0.0, %v145
    %147 = vmatmul.f32.gmra.mxu0 %v75
    %v148 = vpop.f32.mrf.mxu0
    %v149 = vadd.f32 0.0, %v148
    %150 = vmatmul.f32.gmra.mxu0 %v76
    %v151 = vpop.f32.mrf.mxu0
    %v152 = vadd.f32 0.0, %v151
    %153 = vmatmul.f32.gmra.mxu0 %v77
    %v154 = vpop.f32.mrf.mxu0
    %v155 = vadd.f32 0.0, %v154
    %156 = vmatmul.f32.gmra.mxu0 %v78
    %v157 = vpop.f32.mrf.mxu0
    %v158 = vadd.f32 0.0, %v157
    %159 = vdwg.mxu0
    %160 = vst [vmem:[#allocation10] sm:$0xff] %v113
    %161 = vst [vmem:[#allocation10 + $0x8] sm:$0xff] %v116
    %162 = vst [vmem:[#allocation10 + $0x10] sm:$0xff] %v119
    %163 = vst [vmem:[#allocation10 + $0x18] sm:$0xff] %v122
    %164 = vst [vmem:[#allocation10 + $0x20] sm:$0xff] %v125
    %165 = vst [vmem:[#allocation10 + $0x28] sm:$0xff] %v128
    %166 = vst [vmem:[#allocation10 + $0x30] sm:$0xff] %v131
    %167 = vst [vmem:[#allocation10 + $0x38] sm:$0xff] %v134
    %168 = vst [vmem:[#allocation10 + $0x40] sm:$0xff] %v137
    %169 = vst [vmem:[#allocation10 + $0x48] sm:$0xff] %v140
    %170 = vst [vmem:[#allocation10 + $0x50] sm:$0xff] %v143
    %171 = vst [vmem:[#allocation10 + $0x58] sm:$0xff] %v146
    %172 = vst [vmem:[#allocation10 + $0x60] sm:$0xff] %v149
    %173 = vst [vmem:[#allocation10 + $0x68] sm:$0xff] %v152
    %174 = vst [vmem:[#allocation10 + $0x70] sm:$0xff] %v155
    %175 = vst [vmem:[#allocation10 + $0x78] sm:$0xff] %v158
    // Predicated region
    $region18: #{tpu_custom_call.1} parent=1 // pred_check
      _
    $region19: #{tpu_custom_call.1} parent=1 // pred_check_branch
      %177 = sbr.rel (0) target = $region21
    $region20: #{tpu_custom_call.1} parent=1 // pred_region
      %s178 = sld [smem:[#allocation3]]
      %s179 = sld [smem:[#allocation4]]
      %s180 = smul.u32 16, %s178
      %182 = vsyncadd [#allocation7], 0
      %s183 = sadd.s32 %s179, %s180
      %s184 = smul.addr %s183, 8
      %s185 = scalar_lea.hbm %s4, %s184
      %s186 = sshll.u32 [#allocation10], 4
      %s187 = int_to_ptr.vmem [resolvable:$true] %s186
      %s188 = sshll.u32 %s185, 4
      %s189 = int_to_ptr.hbm [resolvable:$true] %s188
      %194 = dma.vmem_to_hbm [thread:$0]  %s187, 2048, %s189, [#allocation7], 128, 128, 8
    $region21: #{tpu_custom_call.1} parent=1 // pred_fallthru
      _
    // Predicated region
    $region22: #{tpu_custom_call.1} parent=1 // pred_check
      _
    $region23: #{tpu_custom_call.1} parent=1 // pred_check_branch
      %196 = sbr.rel (0) target = $region25
    $region24: #{tpu_custom_call.1} parent=1 // pred_region
      %198 = dma.done [#allocation7], 2048
    $region25: #{tpu_custom_call.1} parent=1 // pred_fallthru
      _
    %199 = vsyncpa [#allocation6], 1
    %200 = vsyncpa [#allocation9], 1
    %201 = vsyncpa [#allocation7], 1

</llo_original>
